<compile_context>
chip_gen: v7x
topology: tpu7x:2x2x1
jax: 0.10.0
libtpu: 0.0.40
codegen_flags: <defaults>
</compile_context>

<pallas_src>
import functools

import jax
import jax.numpy as jnp
from jax.experimental import pallas as pl
from jax.experimental.pallas import tpu as pltpu

HIDDEN_SIZE = 10     # hidden_size in the PyTorch module
OUTPUT_SIZE = 16     # output_size (vocab) -- module-level global in the original script
P_DROPOUT = 0.3      # see TODO in the kernel


def _decoder_kernel(idx_ref,      # SMEM (T,) int32 scalar-prefetch (consumed by index_maps)
                    x_ref,        # (1, Hp)       embedding row for this step (gathered via index_map)
                    h0_ref,       # (1, Hp)       initial hidden state (zero-padded)
                    wbig_ref,     # (2Hp, 4Hp)    fused gate weights, rows [x ; h], cols [r|z|gx_n|gh_n]
                    bbig_ref,     # (1, 4Hp)      fused gate bias
                    wo_ref,       # (Hp, Opad)    output linear weight (pre-transposed, zero-padded)
                    bo_ref,       # (1, Opad)     output linear bias (-1e30 in padded vocab lanes)
                    logp_ref,     # out: (1, Opad) log-probs for this step
                    hnew_ref,     # out: (1, Hp)   final hidden state
                    xh_scratch):  # VMEM (1, 2Hp)  persistent [x | h] row carried across steps
    step = pl.program_id(0)
    Hp = h0_ref.shape[1]

    @pl.when(step == 0)
    def _():
        xh_scratch[:, Hp:2 * Hp] = h0_ref[...]

    # TODO(synk): nn.Dropout(p=0.3) on the embedded token is training-mode behavior;
    # implemented as eval-mode identity (no masking) for determinism.
    xh_scratch[:, 0:Hp] = x_ref[...]

    xh = xh_scratch[...]                                   # (1, 2Hp): [x | h_prev]
    h = xh[:, Hp:2 * Hp]

    # Single fused gate matmul (one MXU push instead of six tiny ones) + fused bias.
    gates = jnp.dot(xh, wbig_ref[...],
                    preferred_element_type=jnp.float32) + bbig_ref[...]    # (1, 4Hp)

    r = jax.nn.sigmoid(gates[:, 0:Hp])
    z = jax.nn.sigmoid(gates[:, Hp:2 * Hp])
    n = jnp.tanh(gates[:, 2 * Hp:3 * Hp] + r * gates[:, 3 * Hp:4 * Hp])
    h_new = (1.0 - z) * n + z * h                          # (1, Hp); padded lanes stay 0

    xh_scratch[:, Hp:2 * Hp] = h_new                       # carry to next step
    hnew_ref[...] = h_new.astype(hnew_ref.dtype)

    # Linear(hidden -> output) + LogSoftmax over a lane-dense padded row.
    logits = jnp.dot(h_new, wo_ref[...],
                     preferred_element_type=jnp.float32) + bo_ref[...]     # (1, Opad)
    m = jnp.max(logits, axis=1, keepdims=True)
    lse = jnp.log(jnp.sum(jnp.exp(logits - m), axis=1, keepdims=True)) + m
    logp_ref[...] = (logits - lse).astype(logp_ref.dtype)


@functools.partial(jax.jit, static_argnames=("output_size",))
def decoder_forward(idx_seq, hidden, fused, output_size):
    """Run T decode steps in one pallas_call.

    idx_seq: (T,) int32 token indices. hidden: (1, H) initial hidden state.
    Returns (log_probs (T, output_size), final hidden (1, H)).
    """
    emb, w_big, b_big, wo, bo = (fused["emb"], fused["w_big"], fused["b_big"],
                                 fused["wo"], fused["bo"])
    T = idx_seq.shape[0]
    H = hidden.shape[1]
    Hp = emb.shape[2]
    Hp2, Hp4 = w_big.shape
    Opad = wo.shape[1]

    # Zero-pad the initial hidden state to the lane-dense width.
    h0 = jnp.zeros((1, Hp), jnp.float32).at[:, :H].set(hidden.astype(jnp.float32))

    grid_spec = pltpu.PrefetchScalarGridSpec(
        num_scalar_prefetch=1,
        grid=(T,),
        in_specs=[
            # One embedding row per step, gathered via the prefetched indices.
            pl.BlockSpec((None, 1, Hp), lambda i, idx: (idx[i], 0, 0)),
            # Constant index_maps: resident in VMEM for the whole decode.
            pl.BlockSpec((1, Hp), lambda i, idx: (0, 0)),        # initial hidden
            pl.BlockSpec((Hp2, Hp4), lambda i, idx: (0, 0)),     # fused gate weights
            pl.BlockSpec((1, Hp4), lambda i, idx: (0, 0)),       # fused gate bias
            pl.BlockSpec((Hp, Opad), lambda i, idx: (0, 0)),     # output weight
            pl.BlockSpec((1, Opad), lambda i, idx: (0, 0)),      # output bias
        ],
        out_specs=[
            pl.BlockSpec((None, 1, Opad), lambda i, idx: (i, 0, 0)),  # per-step log-probs
            pl.BlockSpec((1, Hp), lambda i, idx: (0, 0)),             # final hidden
        ],
        scratch_shapes=[pltpu.VMEM((1, 2 * Hp), jnp.float32)],
    )

    logp_pad, h_new_pad = pl.pallas_call(
        _decoder_kernel,
        grid_spec=grid_spec,
        out_shape=(
            jax.ShapeDtypeStruct((T, 1, Opad), jnp.float32),
            jax.ShapeDtypeStruct((1, Hp), jnp.float32),
        ),
        compiler_params=pltpu.CompilerParams(
            dimension_semantics=("arbitrary",)),   # steps are sequential (hidden carry)
    )(idx_seq, emb, h0, w_big, b_big, wo, bo)

    return logp_pad.reshape(T, Opad)[:, :output_size], h_new_pad[:, :H]


def fuse_params(raw):
    """Glue code: PyTorch-layout params -> fused, lane-padded kernel layout (done once)."""
    O, H = raw["emb"].shape
    Hp = ((H + 127) // 128) * 128          # -> 128 for H=10
    Opad = ((O + 127) // 128) * 128        # -> 128 for O=16

    wi = raw["w_ih"].reshape(3, H, H)      # gate-major [r, z, n], each (out, in)
    wh = raw["w_hh"].reshape(3, H, H)
    bi = raw["b_ih"].reshape(3, H)
    bh = raw["b_hh"].reshape(3, H)

    # W_big rows: [x (lanes 0..Hp) ; h (lanes Hp..2Hp)]; cols: [ r | z | gx_n | gh_n ], each Hp wide.
    w_big = jnp.zeros((2 * Hp, 4 * Hp), jnp.float32)
    w_big = w_big.at[:H, 0 * Hp:0 * Hp + H].set(wi[0].T)
    w_big = w_big.at[:H, 1 * Hp:1 * Hp + H].set(wi[1].T)
    w_big = w_big.at[:H, 2 * Hp:2 * Hp + H].set(wi[2].T)
    w_big = w_big.at[Hp:Hp + H, 0 * Hp:0 * Hp + H].set(wh[0].T)
    w_big = w_big.at[Hp:Hp + H, 1 * Hp:1 * Hp + H].set(wh[1].T)
    w_big = w_big.at[Hp:Hp + H, 3 * Hp:3 * Hp + H].set(wh[2].T)

    b_big = jnp.zeros((1, 4 * Hp), jnp.float32)
    b_big = b_big.at[0, 0 * Hp:0 * Hp + H].set(bi[0] + bh[0])
    b_big = b_big.at[0, 1 * Hp:1 * Hp + H].set(bi[1] + bh[1])
    b_big = b_big.at[0, 2 * Hp:2 * Hp + H].set(bi[2])
    b_big = b_big.at[0, 3 * Hp:3 * Hp + H].set(bh[2])

    wo_pad = jnp.zeros((Hp, Opad), jnp.float32).at[:H, :O].set(raw["w_out"].T)
    bo_pad = jnp.full((1, Opad), -1e30, jnp.float32).at[0, :O].set(raw["b_out"])

    emb_pad = jnp.zeros((O, 1, Hp), jnp.float32).at[:, 0, :H].set(raw["emb"])

    return {"emb": emb_pad, "w_big": w_big, "b_big": b_big, "wo": wo_pad, "bo": bo_pad}


def _reference_forward(idx_seq, hidden, raw):
    """Pure-JAX reference matching PyTorch semantics (eval-mode dropout), T steps."""
    H = raw["emb"].shape[1]
    h = hidden
    outs = []
    for t in range(idx_seq.shape[0]):
        x = raw["emb"][idx_seq[t]][None, :]                       # (1, H)
        gi = x @ raw["w_ih"].T + raw["b_ih"]                      # (1, 3H)
        gh = h @ raw["w_hh"].T + raw["b_hh"]                      # (1, 3H)
        r = jax.nn.sigmoid(gi[:, 0:H] + gh[:, 0:H])
        z = jax.nn.sigmoid(gi[:, H:2 * H] + gh[:, H:2 * H])
        n = jnp.tanh(gi[:, 2 * H:] + r * gh[:, 2 * H:])
        h = (1.0 - z) * n + z * h
        logits = h @ raw["w_out"].T + raw["b_out"]
        outs.append(jax.nn.log_softmax(logits, axis=1))
    return jnp.concatenate(outs, axis=0), h


def make_params(key, output_size=OUTPUT_SIZE, hidden_size=HIDDEN_SIZE):
    """PyTorch-layout parameters: nn.Embedding / nn.GRU (weight_ih/hh, gate order r,z,n) / nn.Linear."""
    ks = jax.random.split(key, 7)
    H, O = hidden_size, output_size
    s = 0.1
    return {
        "emb":   jax.random.normal(ks[0], (O, H), jnp.float32),
        "w_ih":  jax.random.normal(ks[1], (3 * H, H), jnp.float32) * s,
        "w_hh":  jax.random.normal(ks[2], (3 * H, H), jnp.float32) * s,
        "b_ih":  jax.random.normal(ks[3], (3 * H,), jnp.float32) * s,
        "b_hh":  jax.random.normal(ks[4], (3 * H,), jnp.float32) * s,
        "w_out": jax.random.normal(ks[5], (O, H), jnp.float32) * s,
        "b_out": jax.random.normal(ks[6], (O,), jnp.float32) * s,
    }


if __name__ == "__main__":
    key = jax.random.PRNGKey(0)
    pkey, hkey = jax.random.split(key)
    raw = make_params(pkey)
    fused = fuse_params(raw)

    hidden = jax.random.normal(hkey, (1, HIDDEN_SIZE), jnp.float32)  # squeezed (1,1,H) -> (1,H)

    # Multi-step decode (T steps amortize weight DMA + launch overhead in one pallas_call).
    idx_seq = jnp.array([3, 0, 7, 12, 5, 9], dtype=jnp.int32)
    T = idx_seq.shape[0]
    log_probs, h_new = decoder_forward(idx_seq, hidden, fused, OUTPUT_SIZE)
    jax.block_until_ready((log_probs, h_new))

    ref_lp, ref_h = _reference_forward(idx_seq, hidden, raw)
    assert log_probs.shape == (T, OUTPUT_SIZE) and h_new.shape == (1, HIDDEN_SIZE)
    # Tolerance covers TPU default matmul precision (bf16-pass MXU) vs XLA reference.
    assert jnp.allclose(log_probs, ref_lp, atol=2e-3, rtol=2e-3), float(
        jnp.max(jnp.abs(log_probs - ref_lp)))
    assert jnp.allclose(h_new, ref_h, atol=2e-3, rtol=2e-3), float(
        jnp.max(jnp.abs(h_new - ref_h)))

    # Single-step call: exactly the original PyTorch forward(input, hidden).
    lp1, h1 = decoder_forward(idx_seq[:1], hidden, fused, OUTPUT_SIZE)
    jax.block_until_ready((lp1, h1))
    ref_lp1, ref_h1 = _reference_forward(idx_seq[:1], hidden, raw)
    assert jnp.allclose(lp1, ref_lp1, atol=2e-3, rtol=2e-3)
    assert jnp.allclose(h1, ref_h1, atol=2e-3, rtol=2e-3)

    print("KERNEL_OK")
</pallas_src>

<mosaic_0001>
module attributes {stable_mosaic.version = 11 : i64} {
  func.func @_decoder_kernel(%arg0: i32, %arg1: memref<6xi32, #tpu.memory_space<smem>>, %arg2: memref<1x1x128xf32, #tpu.memory_space<vmem>>, %arg3: memref<1x128xf32, #tpu.memory_space<vmem>>, %arg4: memref<256x512xf32, #tpu.memory_space<vmem>>, %arg5: memref<1x512xf32, #tpu.memory_space<vmem>>, %arg6: memref<128x128xf32, #tpu.memory_space<vmem>>, %arg7: memref<1x128xf32, #tpu.memory_space<vmem>>, %arg8: memref<1x1x128xf32, #tpu.memory_space<vmem>>, %arg9: memref<1x128xf32, #tpu.memory_space<vmem>>, %arg10: memref<1x256xf32, #tpu.memory_space<vmem>>) attributes {dimension_semantics = [#tpu.dimension_semantics<arbitrary>], iteration_bounds = array<i64: 6>, scalar_prefetch = 1 : i64, scratch_operands = 1 : i64, tpu.core_type = #tpu.core_type<tc>, window_params = [{transform_indices = @transform_0, window_bounds = array<i64: 1, 1, 128>}, {pipeline_mode = #tpu.pipeline_mode<synchronous>, transform_indices = @transform_1, window_bounds = array<i64: 1, 128>}, {pipeline_mode = #tpu.pipeline_mode<synchronous>, transform_indices = @transform_2, window_bounds = array<i64: 256, 512>}, {pipeline_mode = #tpu.pipeline_mode<synchronous>, transform_indices = @transform_3, window_bounds = array<i64: 1, 512>}, {pipeline_mode = #tpu.pipeline_mode<synchronous>, transform_indices = @transform_4, window_bounds = array<i64: 128, 128>}, {pipeline_mode = #tpu.pipeline_mode<synchronous>, transform_indices = @transform_5, window_bounds = array<i64: 1, 128>}, {transform_indices = @transform_6, window_bounds = array<i64: 1, 1, 128>}, {pipeline_mode = #tpu.pipeline_mode<synchronous>, transform_indices = @transform_7, window_bounds = array<i64: 1, 128>}]} {
    %c0_i32 = arith.constant 0 : i32
    %0 = arith.cmpi eq, %arg0, %c0_i32 : i32
    %1 = arith.extui %0 : i1 to i32
    %c0_i32_0 = arith.constant 0 : i32
    %2 = arith.cmpi ne, %1, %c0_i32_0 : i32
    scf.if %2 {
      %c0_27 = arith.constant 0 : index
      %c0_28 = arith.constant 0 : index
      %54 = vector.load %arg3[%c0_27, %c0_28] : memref<1x128xf32, #tpu.memory_space<vmem>>, vector<1x128xf32>
      %c0_29 = arith.constant 0 : index
      %c128_30 = arith.constant 128 : index
      %55 = vector.load %arg10[%c0_29, %c128_30] : memref<1x256xf32, #tpu.memory_space<vmem>>, vector<1x128xf32>
      tpu.vector_store %arg10[%c0_29, %c128_30], %54 {strides = array<i32>} : memref<1x256xf32, #tpu.memory_space<vmem>>, vector<1x128xf32>,
    } else {
    }
    %c0 = arith.constant 0 : index
    %c0_1 = arith.constant 0 : index
    %c0_2 = arith.constant 0 : index
    %3 = vector.load %arg2[%c0, %c0_1, %c0_2] : memref<1x1x128xf32, #tpu.memory_space<vmem>>, vector<1x1x128xf32>
    %4 = vector.shape_cast %3 : vector<1x1x128xf32> to vector<1x128xf32>
    %c0_3 = arith.constant 0 : index
    %c0_4 = arith.constant 0 : index
    %5 = vector.load %arg10[%c0_3, %c0_4] : memref<1x256xf32, #tpu.memory_space<vmem>>, vector<1x128xf32>
    tpu.vector_store %arg10[%c0_3, %c0_4], %4 {strides = array<i32>} : memref<1x256xf32, #tpu.memory_space<vmem>>, vector<1x128xf32>,
    %c0_5 = arith.constant 0 : index
    %c0_6 = arith.constant 0 : index
    %6 = vector.load %arg10[%c0_5, %c0_6] : memref<1x256xf32, #tpu.memory_space<vmem>>, vector<1x256xf32>
    %7 = vector.extract_strided_slice %6 {offsets = [0, 128], sizes = [1, 128], strides = [1, 1]} : vector<1x256xf32> to vector<1x128xf32>
    %c0_7 = arith.constant 0 : index
    %c0_8 = arith.constant 0 : index
    %8 = vector.load %arg4[%c0_7, %c0_8] : memref<256x512xf32, #tpu.memory_space<vmem>>, vector<256x512xf32>
    %cst = arith.constant dense<0.000000e+00> : vector<1x512xf32>
    %9 = tpu.matmul %6, %8, %cst {dimension_numbers = #tpu.dot_dimension_numbers<[1], [0], [0], [1], [0, 0, 1, 1], [], []>} : vector<1x256xf32>, vector<256x512xf32>, vector<1x512xf32> -> vector<1x512xf32>
    %c0_9 = arith.constant 0 : index
    %c0_10 = arith.constant 0 : index
    %10 = vector.load %arg5[%c0_9, %c0_10] : memref<1x512xf32, #tpu.memory_space<vmem>>, vector<1x512xf32>
    %11 = arith.addf %9, %10 : vector<1x512xf32>
    %12 = vector.extract_strided_slice %11 {offsets = [0, 0], sizes = [1, 128], strides = [1, 1]} : vector<1x512xf32> to vector<1x128xf32>
    %13 = arith.negf %12 : vector<1x128xf32>
    %14 = math.exp %13 : vector<1x128xf32>
    %cst_11 = arith.constant 1.000000e+00 : f32
    %15 = vector.broadcast %cst_11 : f32 to vector<1x128xf32>
    %16 = arith.addf %15, %14 : vector<1x128xf32>
    %17 = arith.divf %15, %16 : vector<1x128xf32>
    %18 = vector.extract_strided_slice %11 {offsets = [0, 128], sizes = [1, 128], strides = [1, 1]} : vector<1x512xf32> to vector<1x128xf32>
    %19 = arith.negf %18 : vector<1x128xf32>
    %20 = math.exp %19 : vector<1x128xf32>
    %cst_12 = arith.constant 1.000000e+00 : f32
    %21 = vector.broadcast %cst_12 : f32 to vector<1x128xf32>
    %22 = arith.addf %21, %20 : vector<1x128xf32>
    %23 = arith.divf %21, %22 : vector<1x128xf32>
    %24 = vector.extract_strided_slice %11 {offsets = [0, 256], sizes = [1, 128], strides = [1, 1]} : vector<1x512xf32> to vector<1x128xf32>
    %25 = vector.extract_strided_slice %11 {offsets = [0, 384], sizes = [1, 128], strides = [1, 1]} : vector<1x512xf32> to vector<1x128xf32>
    %26 = arith.mulf %17, %25 : vector<1x128xf32>
    %27 = arith.addf %24, %26 : vector<1x128xf32>
    %28 = math.tanh %27 : vector<1x128xf32>
    %cst_13 = arith.constant 1.000000e+00 : f32
    %29 = vector.broadcast %cst_13 : f32 to vector<1x128xf32>
    %30 = arith.subf %29, %23 : vector<1x128xf32>
    %31 = arith.mulf %30, %28 : vector<1x128xf32>
    %32 = arith.mulf %23, %7 : vector<1x128xf32>
    %33 = arith.addf %31, %32 : vector<1x128xf32>
    %c0_14 = arith.constant 0 : index
    %c128 = arith.constant 128 : index
    %34 = vector.load %arg10[%c0_14, %c128] : memref<1x256xf32, #tpu.memory_space<vmem>>, vector<1x128xf32>
    tpu.vector_store %arg10[%c0_14, %c128], %33 {strides = array<i32>} : memref<1x256xf32, #tpu.memory_space<vmem>>, vector<1x128xf32>,
    %c0_15 = arith.constant 0 : index
    %c0_16 = arith.constant 0 : index
    %35 = vector.load %arg9[%c0_15, %c0_16] : memref<1x128xf32, #tpu.memory_space<vmem>>, vector<1x128xf32>
    tpu.vector_store %arg9[%c0_15, %c0_16], %33 {strides = array<i32>} : memref<1x128xf32, #tpu.memory_space<vmem>>, vector<1x128xf32>,
    %c0_17 = arith.constant 0 : index
    %c0_18 = arith.constant 0 : index
    %36 = vector.load %arg6[%c0_17, %c0_18] : memref<128x128xf32, #tpu.memory_space<vmem>>, vector<128x128xf32>
    %cst_19 = arith.constant dense<0.000000e+00> : vector<1x128xf32>
    %37 = tpu.matmul %33, %36, %cst_19 {dimension_numbers = #tpu.dot_dimension_numbers<[1], [0], [0], [1], [0, 0, 1, 1], [], []>} : vector<1x128xf32>, vector<128x128xf32>, vector<1x128xf32> -> vector<1x128xf32>
    %c0_20 = arith.constant 0 : index
    %c0_21 = arith.constant 0 : index
    %38 = vector.load %arg7[%c0_20, %c0_21] : memref<1x128xf32, #tpu.memory_space<vmem>>, vector<1x128xf32>
    %39 = arith.addf %37, %38 : vector<1x128xf32>
    %cst_22 = arith.constant dense<0xFF800000> : vector<1xf32>
    %40 = vector.multi_reduction <maximumf>, %39, %cst_22 [1] : vector<1x128xf32> to vector<1xf32>
    %41 = vector.shape_cast %40 : vector<1xf32> to vector<1x1xf32>
    %42 = vector.broadcast %41 : vector<1x1xf32> to vector<1x128xf32>
    %43 = arith.subf %39, %42 : vector<1x128xf32>
    %44 = math.exp %43 : vector<1x128xf32>
    %cst_23 = arith.constant dense<0.000000e+00> : vector<1xf32>
    %45 = vector.multi_reduction <add>, %44, %cst_23 [1] : vector<1x128xf32> to vector<1xf32>
    %46 = vector.shape_cast %45 : vector<1xf32> to vector<1x1xf32>
    %47 = math.log %46 : vector<1x1xf32>
    %48 = arith.addf %47, %41 : vector<1x1xf32>
    %49 = vector.broadcast %48 : vector<1x1xf32> to vector<1x128xf32>
    %50 = arith.subf %39, %49 : vector<1x128xf32>
    %c0_24 = arith.constant 0 : index
    %c0_25 = arith.constant 0 : index
    %c0_26 = arith.constant 0 : index
    %51 = vector.load %arg8[%c0_24, %c0_25, %c0_26] : memref<1x1x128xf32, #tpu.memory_space<vmem>>, vector<1x1x128xf32>
    %52 = vector.shape_cast %51 : vector<1x1x128xf32> to vector<1x128xf32>
    %53 = vector.shape_cast %50 : vector<1x128xf32> to vector<1x1x128xf32>
    tpu.vector_store %arg8[%c0_24, %c0_25, %c0_26], %53 {strides = array<i32>} : memref<1x1x128xf32, #tpu.memory_space<vmem>>, vector<1x1x128xf32>,
    return
  }
  func.func @transform_0(%arg0: i32, %arg1: memref<6xi32, #tpu.memory_space<smem>>) -> (i32, i32, i32) {
    %0 = arith.index_cast %arg0 : i32 to index
    %1 = memref.load %arg1[%0] : memref<6xi32, #tpu.memory_space<smem>>
    %c0_i32 = arith.constant 0 : i32
    %c0_i32_0 = arith.constant 0 : i32
    %c0_i32_1 = arith.constant 0 : i32
    return %1, %c0_i32, %c0_i32_0 : i32, i32, i32
  }
  func.func @transform_1(%arg0: i32, %arg1: memref<6xi32, #tpu.memory_space<smem>>) -> (i32, i32) {
    %c0_i32 = arith.constant 0 : i32
    %c0_i32_0 = arith.constant 0 : i32
    %c0_i32_1 = arith.constant 0 : i32
    return %c0_i32, %c0_i32_0 : i32, i32
  }
  func.func @transform_2(%arg0: i32, %arg1: memref<6xi32, #tpu.memory_space<smem>>) -> (i32, i32) {
    %c0_i32 = arith.constant 0 : i32
    %c0_i32_0 = arith.constant 0 : i32
    %c0_i32_1 = arith.constant 0 : i32
    return %c0_i32, %c0_i32_0 : i32, i32
  }
  func.func @transform_3(%arg0: i32, %arg1: memref<6xi32, #tpu.memory_space<smem>>) -> (i32, i32) {
    %c0_i32 = arith.constant 0 : i32
    %c0_i32_0 = arith.constant 0 : i32
    %c0_i32_1 = arith.constant 0 : i32
    return %c0_i32, %c0_i32_0 : i32, i32
  }
  func.func @transform_4(%arg0: i32, %arg1: memref<6xi32, #tpu.memory_space<smem>>) -> (i32, i32) {
    %c0_i32 = arith.constant 0 : i32
    %c0_i32_0 = arith.constant 0 : i32
    %c0_i32_1 = arith.constant 0 : i32
    return %c0_i32, %c0_i32_0 : i32, i32
  }
  func.func @transform_5(%arg0: i32, %arg1: memref<6xi32, #tpu.memory_space<smem>>) -> (i32, i32) {
    %c0_i32 = arith.constant 0 : i32
    %c0_i32_0 = arith.constant 0 : i32
    %c0_i32_1 = arith.constant 0 : i32
    return %c0_i32, %c0_i32_0 : i32, i32
  }
  func.func @transform_6(%arg0: i32, %arg1: memref<6xi32, #tpu.memory_space<smem>>) -> (i32, i32, i32) {
    %c0_i32 = arith.constant 0 : i32
    %c0_i32_0 = arith.constant 0 : i32
    %c0_i32_1 = arith.constant 0 : i32
    return %arg0, %c0_i32, %c0_i32_0 : i32, i32, i32
  }
  func.func @transform_7(%arg0: i32, %arg1: memref<6xi32, #tpu.memory_space<smem>>) -> (i32, i32) {
    %c0_i32 = arith.constant 0 : i32
    %c0_i32_0 = arith.constant 0 : i32
    %c0_i32_1 = arith.constant 0 : i32
    return %c0_i32, %c0_i32_0 : i32, i32
  }
}

</mosaic_0001>

<llo_original>
// kernel: decoder_forward.1
$region0: #{decoder_forward.1}
  #allocation0 [shape = 'u32[]', space=smem, size = 0x4, offset = 0x4, fixed_abs, tag = 'smem constant byte address 0x4 - core index']
  #allocation1 [shape = 'u32[144,128]{1,0:T(1,128)}', space=vmem, size = 0x12000, scoped, tag = 'internal scratch']
  #allocation2 [shape = 'f32[1,256]{1,0:T(1,128)}', space=vmem, size = 0x400, scoped, tag = 'scratch operand']
  #allocation3 [shape = 's32[1]{0}', space=sflag, size = 0x4, scoped, tag = 'scoped memory for decoder_forward.1']
  #allocation4 [shape = 'u8[512]{0}', space=smem, size = 0x200, scoped, tag = 'prefetched SMEM operand 0']
  %s0 = inlined_call_operand.vmem [shape: s32[6], index: 0, kind: input, shape index: {}]
  %s1 = inlined_call_operand.vmem [shape: f32[16,1,128], index: 1, kind: input, shape index: {}]
  %s2 = inlined_call_operand.vmem [shape: f32[1,128], index: 2, kind: input, shape index: {}]
  %s3 = inlined_call_operand.hbm [shape: f32[256,512], index: 3, kind: input, shape index: {}]
  %s4 = inlined_call_operand.vmem [shape: f32[1,512], index: 4, kind: input, shape index: {}]
  %s5 = inlined_call_operand.hbm [shape: f32[128,128], index: 5, kind: input, shape index: {}]
  %s6 = inlined_call_operand.vmem [shape: f32[1,128], index: 6, kind: input, shape index: {}]
  %s7 = inlined_call_operand.vmem [shape: f32[6,1,128], index: 7, kind: output, shape index: {0}]
  %s8 = inlined_call_operand.hbm [shape: f32[1,128], index: 8, kind: output, shape index: {1}]
  %9 = xla_tuple %s7, %s8
  %s10 = sld [smem:[#allocation0]]
  $region77: #{decoder_forward.1} parent=0
    _
  %s12 = ssub.s32 1, %s10
  %s13 = scalar_select 0, %s12, %s10
  %s14 = sshll.u32 %s0, 4
  %s15 = int_to_ptr.vmem [resolvable:$true] %s14
  %17 = dma.vmem_to_smem %s15, 16, [#allocation4], [#allocation3]
  %18 = dma.done [#allocation3], 16
  %19 = sfence
  $region1: #{decoder_forward.1} parent=0
    #allocation5 [shape = 'u8[524288]{0}', space=vmem, size = 0x80000, scoped, tag = 'input window, operand 3, single buffered']
    #allocation6 [shape = 's32[2]{0}', space=sflag, size = 0x8, scoped, tag = 'scoped memory for decoder_forward.1']
    #allocation7 [shape = 's32[2]{0}', space=sflag, size = 0x8, scoped, tag = 'scoped memory for decoder_forward.1']
    #allocation8 [shape = 'u8[65536]{0}', space=vmem, size = 0x10000, scoped, tag = 'input window, operand 5, single buffered']
    #allocation9 [shape = 's32[1]{0}', space=sflag, size = 0x4, scoped, tag = 'scoped memory for decoder_forward.1']
    #allocation10 [shape = 'u8[512]{0}', space=vmem, size = 0x400, scoped, tag = 'output window, operand 1, single buffered']
    %20 = vsyncpa [#allocation6], 0
    %21 = vsyncpa [#allocation9], 0
    %22 = vsyncpa [#allocation7], 0
    loop: start=0, step=1, limit=8
    $region2: #{decoder_forward.1} parent=1 // loop_pre_header
      _
    $region3: #{decoder_forward.1} parent=1 // loop_header
      %s24 = sphi 0, %s28
      %p25 = scmp.ge.s32.totalorder %s24, 8
      %s36 = sphi 0, %s38
      %s39 = sphi 0, %s36
      %s40 = sphi 0, %s39
      %s56 = sphi 0, %s40
      %s60 = sphi 0, %s60
      %s62 = sphi 0, %s60
      %s63 = sphi 0, %s62
      %s77 = sphi 0, %s63
      %s81 = sphi 0, %s81
      %s83 = sphi 0, %s81
      %s84 = sphi 0, %s83
      %s98 = sphi 0, %s84
      %s102 = sphi 0, %s102
      %s104 = sphi 0, %s102
      %s105 = sphi 0, %s104
      %s119 = sphi 0, %s105
      %s123 = sphi 0, %s123
      %s125 = sphi 0, %s123
      %s126 = sphi 0, %s125
      %s140 = sphi 0, %s126
      %s144 = sphi 0, %s144
      %s146 = sphi 0, %s144
      %s147 = sphi 0, %s146
      %s161 = sphi 0, %s147
      %s167 = sphi 0, %s169
      %s170 = sphi 0, %s167
      %s171 = sphi 0, %s170
      %s187 = sphi 0, %s171
      %s191 = sphi 0, %s191
      %s193 = sphi 0, %s191
      %s194 = sphi 0, %s193
      %s208 = sphi 0, %s194
    $region4: #{decoder_forward.1} parent=1 // loop_header_branch
      %27 = sbr.rel (%p25) target = $region8
    $region5: #{decoder_forward.1} parent=1 // loop_body
      %s29 = ssub.s32 %s24, 1
      %s30 = ssub.s32 %s24, 2
      %s31 = sadd.s32 %s24, 1
      %s32 = sld [smem:[#allocation4 + %s24]]
      %s33 = sld [smem:[#allocation4 + %s31]]
      %s34 = ssub.s32 %s32, %s33
      %p35 = scmp.eq.s32.totalorder %s34, 0
      %s37 = sadd.s32 %s36, 1
      %s38 = scalar_select %p35, %s36, %s37
      %p41 = pneg %p35
      %p42 = scmp.eq.s32.totalorder %s24, 5
      %p43 = por %p41, %p42
      %p44 = scmp.ne.s32.totalorder %s36, %s39
      %p45 = scmp.eq.s32.totalorder %s24, 0
      %p46 = por %p44, %p45
      %p47 = scmp.ne.s32.totalorder %s36, %s39
      %p48 = scmp.eq.s32.totalorder %s29, 5
      %p49 = por %p47, %p48
      %p50 = scmp.ne.s32.totalorder %s39, %s40
      %p51 = scmp.eq.s32.totalorder %s29, 0
      %p52 = por %p50, %p51
      %p53 = scmp.ne.s32.totalorder %s39, %s40
      %p54 = scmp.eq.s32.totalorder %s30, 5
      %p55 = por %p53, %p54
      %p57 = scmp.ne.s32.totalorder %s40, %s56
      %p58 = scmp.eq.s32.totalorder %s30, 0
      %p59 = por %p57, %p58
      %s61 = sadd.s32 %s60, 1
      %p64 = scmp.eq.s32.totalorder %s24, 5
      %p65 = scmp.ne.s32.totalorder %s60, %s62
      %p66 = scmp.eq.s32.totalorder %s24, 0
      %p67 = por %p65, %p66
      %p68 = scmp.ne.s32.totalorder %s60, %s62
      %p69 = scmp.eq.s32.totalorder %s29, 5
      %p70 = por %p68, %p69
      %p71 = scmp.ne.s32.totalorder %s62, %s63
      %p72 = scmp.eq.s32.totalorder %s29, 0
      %p73 = por %p71, %p72
      %p74 = scmp.ne.s32.totalorder %s62, %s63
      %p75 = scmp.eq.s32.totalorder %s30, 5
      %p76 = por %p74, %p75
      %p78 = scmp.ne.s32.totalorder %s63, %s77
      %p79 = scmp.eq.s32.totalorder %s30, 0
      %p80 = por %p78, %p79
      %s82 = sadd.s32 %s81, 1
      %p85 = scmp.eq.s32.totalorder %s24, 5
      %p86 = scmp.ne.s32.totalorder %s81, %s83
      %p87 = scmp.eq.s32.totalorder %s24, 0
      %p88 = por %p86, %p87
      %p89 = scmp.ne.s32.totalorder %s81, %s83
      %p90 = scmp.eq.s32.totalorder %s29, 5
      %p91 = por %p89, %p90
      %p92 = scmp.ne.s32.totalorder %s83, %s84
      %p93 = scmp.eq.s32.totalorder %s29, 0
      %p94 = por %p92, %p93
      %p95 = scmp.ne.s32.totalorder %s83, %s84
      %p96 = scmp.eq.s32.totalorder %s30, 5
      %p97 = por %p95, %p96
      %p99 = scmp.ne.s32.totalorder %s84, %s98
      %p100 = scmp.eq.s32.totalorder %s30, 0
      %p101 = por %p99, %p100
      %s103 = sadd.s32 %s102, 1
      %p106 = scmp.eq.s32.totalorder %s24, 5
      %p107 = scmp.ne.s32.totalorder %s102, %s104
      %p108 = scmp.eq.s32.totalorder %s24, 0
      %p109 = por %p107, %p108
      %p110 = scmp.ne.s32.totalorder %s102, %s104
      %p111 = scmp.eq.s32.totalorder %s29, 5
      %p112 = por %p110, %p111
      %p113 = scmp.ne.s32.totalorder %s104, %s105
      %p114 = scmp.eq.s32.totalorder %s29, 0
      %p115 = por %p113, %p114
      %p116 = scmp.ne.s32.totalorder %s104, %s105
      %p117 = scmp.eq.s32.totalorder %s30, 5
      %p118 = por %p116, %p117
      %p120 = scmp.ne.s32.totalorder %s105, %s119
      %p121 = scmp.eq.s32.totalorder %s30, 0
      %p122 = por %p120, %p121
      %s124 = sadd.s32 %s123, 1
      %p127 = scmp.eq.s32.totalorder %s24, 5
      %p128 = scmp.ne.s32.totalorder %s123, %s125
      %p129 = scmp.eq.s32.totalorder %s24, 0
      %p130 = por %p128, %p129
      %p131 = scmp.ne.s32.totalorder %s123, %s125
      %p132 = scmp.eq.s32.totalorder %s29, 5
      %p133 = por %p131, %p132
      %p134 = scmp.ne.s32.totalorder %s125, %s126
      %p135 = scmp.eq.s32.totalorder %s29, 0
      %p136 = por %p134, %p135
      %p137 = scmp.ne.s32.totalorder %s125, %s126
      %p138 = scmp.eq.s32.totalorder %s30, 5
      %p139 = por %p137, %p138
      %p141 = scmp.ne.s32.totalorder %s126, %s140
      %p142 = scmp.eq.s32.totalorder %s30, 0
      %p143 = por %p141, %p142
      %s145 = sadd.s32 %s144, 1
      %p148 = scmp.eq.s32.totalorder %s24, 5
      %p149 = scmp.ne.s32.totalorder %s144, %s146
      %p150 = scmp.eq.s32.totalorder %s24, 0
      %p151 = por %p149, %p150
      %p152 = scmp.ne.s32.totalorder %s144, %s146
      %p153 = scmp.eq.s32.totalorder %s29, 5
      %p154 = por %p152, %p153
      %p155 = scmp.ne.s32.totalorder %s146, %s147
      %p156 = scmp.eq.s32.totalorder %s29, 0
      %p157 = por %p155, %p156
      %p158 = scmp.ne.s32.totalorder %s146, %s147
      %p159 = scmp.eq.s32.totalorder %s30, 5
      %p160 = por %p158, %p159
      %p162 = scmp.ne.s32.totalorder %s147, %s161
      %p163 = scmp.eq.s32.totalorder %s30, 0
      %p164 = por %p162, %p163
      %s165 = ssub.s32 %s24, %s31
      %p166 = scmp.eq.s32.totalorder %s165, 0
      %s168 = sadd.s32 %s167, 1
      %s169 = scalar_select %p166, %s167, %s168
      %p172 = pneg %p166
      %p173 = scmp.eq.s32.totalorder %s24, 5
      %p174 = por %p172, %p173
      %p175 = scmp.ne.s32.totalorder %s167, %s170
      %p176 = scmp.eq.s32.totalorder %s24, 0
      %p177 = por %p175, %p176
      %p178 = scmp.ne.s32.totalorder %s167, %s170
      %p179 = scmp.eq.s32.totalorder %s29, 5
      %p180 = por %p178, %p179
      %p181 = scmp.ne.s32.totalorder %s170, %s171
      %p182 = scmp.eq.s32.totalorder %s29, 0
      %p183 = por %p181, %p182
      %p184 = scmp.ne.s32.totalorder %s170, %s171
      %p185 = scmp.eq.s32.totalorder %s30, 5
      %p186 = por %p184, %p185
      %p188 = scmp.ne.s32.totalorder %s171, %s187
      %p189 = scmp.eq.s32.totalorder %s30, 0
      %p190 = por %p188, %p189
      %s192 = sadd.s32 %s191, 1
      %p195 = scmp.eq.s32.totalorder %s24, 5
      %p196 = scmp.ne.s32.totalorder %s191, %s193
      %p197 = scmp.eq.s32.totalorder %s24, 0
      %p198 = por %p196, %p197
      %p199 = scmp.ne.s32.totalorder %s191, %s193
      %p200 = scmp.eq.s32.totalorder %s29, 5
      %p201 = por %p199, %p200
      %p202 = scmp.ne.s32.totalorder %s193, %s194
      %p203 = scmp.eq.s32.totalorder %s29, 0
      %p204 = por %p202, %p203
      %p205 = scmp.ne.s32.totalorder %s193, %s194
      %p206 = scmp.eq.s32.totalorder %s30, 5
      %p207 = por %p205, %p206
      %p209 = scmp.ne.s32.totalorder %s194, %s208
      %p210 = scmp.eq.s32.totalorder %s30, 0
      %p211 = por %p209, %p210
      %p212 = scmp.le.s32.totalorder 1, %s24
      %p213 = scmp.lt.s32.totalorder %s24, 7
      %p214 = pnand %p212, %p213
      %p215 = pneg %p214
      // Predicated region
      $region9: #{decoder_forward.1} parent=5 // pred_check
        _
      $region10: #{decoder_forward.1} parent=5 // pred_check_branch
        %217 = sbr.rel (%p214) target = $region12
      $region11: #{decoder_forward.1} parent=5 // pred_region
        %s218 = ssub.s32 %s24, 1
        // Predicated region
        $region13: #{decoder_forward.1} parent=11 // pred_check
          %p219 = pneg %p73
        $region14: #{decoder_forward.1} parent=11 // pred_check_branch
          %221 = sbr.rel (%p219) target = $region16
        $region15: #{decoder_forward.1} parent=11 // pred_region
          _
        $region16: #{decoder_forward.1} parent=11 // pred_fallthru
          _
        // Predicated region
        $region17: #{decoder_forward.1} parent=11 // pred_check
          %p222 = pneg %p94
        $region18: #{decoder_forward.1} parent=11 // pred_check_branch
          %224 = sbr.rel (%p222) target = $region20
        $region19: #{decoder_forward.1} parent=11 // pred_region
          %s226 = ssub.s32 16384, 16384
          %227 = vsyncadd [#allocation6], %s226
          %s228 = sshll.u32 [#allocation5], 4
          %s229 = int_to_ptr.vmem [resolvable:$true] %s228
          %234 = dma.hbm_to_vmem [thread:$0]  %s3, 16384, %s229, [#allocation6], 512, 512, 32
        $region20: #{decoder_forward.1} parent=11 // pred_fallthru
          _
        // Predicated region
        $region21: #{decoder_forward.1} parent=11 // pred_check
          %p235 = pneg %p115
        $region22: #{decoder_forward.1} parent=11 // pred_check_branch
          %237 = sbr.rel (%p235) target = $region24
        $region23: #{decoder_forward.1} parent=11 // pred_region
          _
        $region24: #{decoder_forward.1} parent=11 // pred_fallthru
          _
        // Predicated region
        $region25: #{decoder_forward.1} parent=11 // pred_check
          %p238 = pneg %p136
        $region26: #{decoder_forward.1} parent=11 // pred_check_branch
          %240 = sbr.rel (%p238) target = $region28
        $region27: #{decoder_forward.1} parent=11 // pred_region
          %s242 = ssub.s32 2048, 2048
          %243 = vsyncadd [#allocation9], %s242
          %s244 = sshll.u32 [#allocation8], 4
          %s245 = int_to_ptr.vmem [resolvable:$true] %s244
          %250 = dma.hbm_to_vmem [thread:$0]  %s5, 2048, %s245, [#allocation9], 128, 128, 8
        $region28: #{decoder_forward.1} parent=11 // pred_fallthru
          _
        // Predicated region
        $region29: #{decoder_forward.1} parent=11 // pred_check
          %p251 = pneg %p157
        $region30: #{decoder_forward.1} parent=11 // pred_check_branch
          %253 = sbr.rel (%p251) target = $region32
        $region31: #{decoder_forward.1} parent=11 // pred_region
          _
        $region32: #{decoder_forward.1} parent=11 // pred_fallthru
          _
      $region12: #{decoder_forward.1} parent=5 // pred_fallthru
        _
      %p254 = scmp.lt.s32.totalorder %s24, 6
      // Predicated region
      $region33: #{decoder_forward.1} parent=5 // pred_check
        %p255 = pneg %p254
      $region34: #{decoder_forward.1} parent=5 // pred_check_branch
        %257 = sbr.rel (%p255) target = $region36
      $region35: #{decoder_forward.1} parent=5 // pred_region
        // Predicated region
        $region37: #{decoder_forward.1} parent=35 // pred_check
          %p258 = pneg %p46
        $region38: #{decoder_forward.1} parent=35 // pred_check_branch
          %260 = sbr.rel (%p258) target = $region40
        $region39: #{decoder_forward.1} parent=35 // pred_region
          %s261 = sld [smem:[#allocation4 + %s24]]
          %p262 = scmp.lt.s32.totalorder %s261, 15
          %s263 = scalar_select %p262, %s261, 15
          %s264 = scalar_lea.vmem %s1, %s263
          %s265 = sld [smem:[#allocation4 + %s24]]
        $region40: #{decoder_forward.1} parent=35 // pred_fallthru
          _
      $region36: #{decoder_forward.1} parent=5 // pred_fallthru
        _
      %p266 = scmp.le.s32.totalorder 1, %s24
      %p267 = scmp.lt.s32.totalorder %s24, 7
      %p268 = pnand %p266, %p267
      %p269 = pneg %p268
      // Predicated region
      $region41: #{decoder_forward.1} parent=5 // pred_check
        _
      $region42: #{decoder_forward.1} parent=5 // pred_check_branch
        %271 = sbr.rel (%p268) target = $region44
      $region43: #{decoder_forward.1} parent=5 // pred_region
        %s272 = ssub.s32 %s24, 1
        // Predicated region
        $region45: #{decoder_forward.1} parent=43 // pred_check
          %p273 = pneg %p94
        $region46: #{decoder_forward.1} parent=43 // pred_check_branch
          %275 = sbr.rel (%p273) target = $region48
        $region47: #{decoder_forward.1} parent=43 // pred_region
          %276 = dma.done [#allocation6], 16384
        $region48: #{decoder_forward.1} parent=43 // pred_fallthru
          _
        // Predicated region
        $region49: #{decoder_forward.1} parent=43 // pred_check
          %p277 = pneg %p136
        $region50: #{decoder_forward.1} parent=43 // pred_check_branch
          %279 = sbr.rel (%p277) target = $region52
        $region51: #{decoder_forward.1} parent=43 // pred_region
          %280 = dma.done [#allocation9], 2048
        $region52: #{decoder_forward.1} parent=43 // pred_fallthru
          _
        %s281 = sld [smem:[#allocation4 + %s29]]
        %p282 = scmp.lt.s32.totalorder %s281, 15
        %s283 = scalar_select %p282, %s281, 15
        %s284 = scalar_lea.vmem %s1, %s283
        %p285 = pneg %p52
        %p286 = pneg %p49
        %p287 = pneg %p73
        %p288 = pneg %p70
        %p289 = pneg %p94
        %p290 = pneg %p91
        %p291 = pneg %p115
        %p292 = pneg %p112
        %p293 = pneg %p136
        %p294 = pneg %p133
        %p295 = pneg %p157
        %p296 = pneg %p154
        %p297 = pneg %p183
        %p298 = pneg %p180
        %p299 = scmp.lt.s32.totalorder %s29, 5
        %s300 = scalar_select %p299, %s29, 5
        %s301 = scalar_lea.vmem %s7, %s300
        %p302 = pneg %p204
        %p303 = pneg %p201
        %s304 = sld [smem:[#allocation4 + %s29]]
        %p305 = scmp.lt.s32.totalorder %s304, 15
        %s306 = scalar_select %p305, %s304, 15
        %s307 = scalar_lea.vmem %s1, %s306
        %s308 = sld [smem:[#allocation4 + %s29]]
        %p309 = scmp.lt.s32.totalorder %s29, 5
        %s310 = scalar_select %p309, %s29, 5
        %s311 = scalar_lea.vmem %s7, %s310
        %p312 = scmp.eq.s32.totalorder %s29, 0
        // Predicated region
        $region53: #{decoder_forward.1} parent=43 // pred_check
          %p313 = pneg %p312
        $region54: #{decoder_forward.1} parent=43 // pred_check_branch
          %315 = sbr.rel (%p313) target = $region56
        $region55: #{decoder_forward.1} parent=43 // pred_region
          %v316 = vld [vmem:[%s2] sm:$0x1]
          %v317 = vlaneseq
          %vm318 = vcmp.ge.s32.totalorder %v317, 0
          %vm319 = vcmp.lt.s32.totalorder %v317, 128
          %vm320 = vmand %vm318, %vm319
          %321 = vst.msk [vmem:[#allocation2 + $0x1] sm:$0x1] %vm320, %v316
        $region56: #{decoder_forward.1} parent=43 // pred_fallthru
          _
        %v322 = vld [vmem:[%s307] sm:$0x1]
        %v323 = vlaneseq
        %vm324 = vcmp.ge.s32.totalorder %v323, 0
        %vm325 = vcmp.lt.s32.totalorder %v323, 128
        %vm326 = vmand %vm324, %vm325
        %327 = vst.msk [vmem:[#allocation2] sm:$0x1] %vm326, %v322
        %v328 = vld [vmem:[#allocation2] sm:$0x3]
        %v329 = vld [vmem:[#allocation5] sm:$0xff]
        %v330 = vld [vmem:[#allocation5 + $0x8] sm:$0xff]
        %v331 = vld [vmem:[#allocation5 + $0x10] sm:$0xff]
        %v332 = vld [vmem:[#allocation5 + $0x18] sm:$0xff]
        %v333 = vld [vmem:[#allocation5 + $0x20] sm:$0xff]
        %v334 = vld [vmem:[#allocation5 + $0x28] sm:$0xff]
        %v335 = vld [vmem:[#allocation5 + $0x30] sm:$0xff]
        %v336 = vld [vmem:[#allocation5 + $0x38] sm:$0xff]
        %v337 = vld [vmem:[#allocation5 + $0x40] sm:$0xff]
        %v338 = vld [vmem:[#allocation5 + $0x48] sm:$0xff]
        %v339 = vld [vmem:[#allocation5 + $0x50] sm:$0xff]
        %v340 = vld [vmem:[#allocation5 + $0x58] sm:$0xff]
        %v341 = vld [vmem:[#allocation5 + $0x60] sm:$0xff]
        %v342 = vld [vmem:[#allocation5 + $0x68] sm:$0xff]
        %v343 = vld [vmem:[#allocation5 + $0x70] sm:$0xff]
        %v344 = vld [vmem:[#allocation5 + $0x78] sm:$0xff]
        %v345 = vld [vmem:[#allocation5 + $0x80] sm:$0xff]
        %v346 = vld [vmem:[#allocation5 + $0x88] sm:$0xff]
        %v347 = vld [vmem:[#allocation5 + $0x90] sm:$0xff]
        %v348 = vld [vmem:[#allocation5 + $0x98] sm:$0xff]
        %v349 = vld [vmem:[#allocation5 + $0xa0] sm:$0xff]
        %v350 = vld [vmem:[#allocation5 + $0xa8] sm:$0xff]
        %v351 = vld [vmem:[#allocation5 + $0xb0] sm:$0xff]
        %v352 = vld [vmem:[#allocation5 + $0xb8] sm:$0xff]
        %v353 = vld [vmem:[#allocation5 + $0xc0] sm:$0xff]
        %v354 = vld [vmem:[#allocation5 + $0xc8] sm:$0xff]
        %v355 = vld [vmem:[#allocation5 + $0xd0] sm:$0xff]
        %v356 = vld [vmem:[#allocation5 + $0xd8] sm:$0xff]
        %v357 = vld [vmem:[#allocation5 + $0xe0] sm:$0xff]
        %v358 = vld [vmem:[#allocation5 + $0xe8] sm:$0xff]
        %v359 = vld [vmem:[#allocation5 + $0xf0] sm:$0xff]
        %v360 = vld [vmem:[#allocation5 + $0xf8] sm:$0xff]
        %v361 = vld [vmem:[#allocation5 + $0x100] sm:$0xff]
        %v362 = vld [vmem:[#allocation5 + $0x108] sm:$0xff]
        %v363 = vld [vmem:[#allocation5 + $0x110] sm:$0xff]
        %v364 = vld [vmem:[#allocation5 + $0x118] sm:$0xff]
        %v365 = vld [vmem:[#allocation5 + $0x120] sm:$0xff]
        %v366 = vld [vmem:[#allocation5 + $0x128] sm:$0xff]
        %v367 = vld [vmem:[#allocation5 + $0x130] sm:$0xff]
        %v368 = vld [vmem:[#allocation5 + $0x138] sm:$0xff]
        %v369 = vld [vmem:[#allocation5 + $0x140] sm:$0xff]
        %v370 = vld [vmem:[#allocation5 + $0x148] sm:$0xff]
        %v371 = vld [vmem:[#allocation5 + $0x150] sm:$0xff]
        %v372 = vld [vmem:[#allocation5 + $0x158] sm:$0xff]
        %v373 = vld [vmem:[#allocation5 + $0x160] sm:$0xff]
        %v374 = vld [vmem:[#allocation5 + $0x168] sm:$0xff]
        %v375 = vld [vmem:[#allocation5 + $0x170] sm:$0xff]
        %v376 = vld [vmem:[#allocation5 + $0x178] sm:$0xff]
        %v377 = vld [vmem:[#allocation5 + $0x180] sm:$0xff]
        %v378 = vld [vmem:[#allocation5 + $0x188] sm:$0xff]
        %v379 = vld [vmem:[#allocation5 + $0x190] sm:$0xff]
        %v380 = vld [vmem:[#allocation5 + $0x198] sm:$0xff]
        %v381 = vld [vmem:[#allocation5 + $0x1a0] sm:$0xff]
        %v382 = vld [vmem:[#allocation5 + $0x1a8] sm:$0xff]
        %v383 = vld [vmem:[#allocation5 + $0x1b0] sm:$0xff]
        %v384 = vld [vmem:[#allocation5 + $0x1b8] sm:$0xff]
        %v385 = vld [vmem:[#allocation5 + $0x1c0] sm:$0xff]
        %v386 = vld [vmem:[#allocation5 + $0x1c8] sm:$0xff]
        %v387 = vld [vmem:[#allocation5 + $0x1d0] sm:$0xff]
        %v388 = vld [vmem:[#allocation5 + $0x1d8] sm:$0xff]
        %v389 = vld [vmem:[#allocation5 + $0x1e0] sm:$0xff]
        %v390 = vld [vmem:[#allocation5 + $0x1e8] sm:$0xff]
        %v391 = vld [vmem:[#allocation5 + $0x1f0] sm:$0xff]
        %v392 = vld [vmem:[#allocation5 + $0x1f8] sm:$0xff]
        %v393 = vld [vmem:[#allocation5 + $0x200] sm:$0xff]
        %v394 = vld [vmem:[#allocation5 + $0x208] sm:$0xff]
        %v395 = vld [vmem:[#allocation5 + $0x210] sm:$0xff]
        %v396 = vld [vmem:[#allocation5 + $0x218] sm:$0xff]
        %v397 = vld [vmem:[#allocation5 + $0x220] sm:$0xff]
        %v398 = vld [vmem:[#allocation5 + $0x228] sm:$0xff]
        %v399 = vld [vmem:[#allocation5 + $0x230] sm:$0xff]
        %v400 = vld [vmem:[#allocation5 + $0x238] sm:$0xff]
        %v401 = vld [vmem:[#allocation5 + $0x240] sm:$0xff]
        %v402 = vld [vmem:[#allocation5 + $0x248] sm:$0xff]
        %v403 = vld [vmem:[#allocation5 + $0x250] sm:$0xff]
        %v404 = vld [vmem:[#allocation5 + $0x258] sm:$0xff]
        %v405 = vld [vmem:[#allocation5 + $0x260] sm:$0xff]
        %v406 = vld [vmem:[#allocation5 + $0x268] sm:$0xff]
        %v407 = vld [vmem:[#allocation5 + $0x270] sm:$0xff]
        %v408 = vld [vmem:[#allocation5 + $0x278] sm:$0xff]
        %v409 = vld [vmem:[#allocation5 + $0x280] sm:$0xff]
        %v410 = vld [vmem:[#allocation5 + $0x288] sm:$0xff]
        %v411 = vld [vmem:[#allocation5 + $0x290] sm:$0xff]
        %v412 = vld [vmem:[#allocation5 + $0x298] sm:$0xff]
        %v413 = vld [vmem:[#allocation5 + $0x2a0] sm:$0xff]
        %v414 = vld [vmem:[#allocation5 + $0x2a8] sm:$0xff]
        %v415 = vld [vmem:[#allocation5 + $0x2b0] sm:$0xff]
        %v416 = vld [vmem:[#allocation5 + $0x2b8] sm:$0xff]
        %v417 = vld [vmem:[#allocation5 + $0x2c0] sm:$0xff]
        %v418 = vld [vmem:[#allocation5 + $0x2c8] sm:$0xff]
        %v419 = vld [vmem:[#allocation5 + $0x2d0] sm:$0xff]
        %v420 = vld [vmem:[#allocation5 + $0x2d8] sm:$0xff]
        %v421 = vld [vmem:[#allocation5 + $0x2e0] sm:$0xff]
        %v422 = vld [vmem:[#allocation5 + $0x2e8] sm:$0xff]
        %v423 = vld [vmem:[#allocation5 + $0x2f0] sm:$0xff]
        %v424 = vld [vmem:[#allocation5 + $0x2f8] sm:$0xff]
        %v425 = vld [vmem:[#allocation5 + $0x300] sm:$0xff]
        %v426 = vld [vmem:[#allocation5 + $0x308] sm:$0xff]
        %v427 = vld [vmem:[#allocation5 + $0x310] sm:$0xff]
        %v428 = vld [vmem:[#allocation5 + $0x318] sm:$0xff]
        %v429 = vld [vmem:[#allocation5 + $0x320] sm:$0xff]
        %v430 = vld [vmem:[#allocation5 + $0x328] sm:$0xff]
        %v431 = vld [vmem:[#allocation5 + $0x330] sm:$0xff]
        %v432 = vld [vmem:[#allocation5 + $0x338] sm:$0xff]
        %v433 = vld [vmem:[#allocation5 + $0x340] sm:$0xff]
        %v434 = vld [vmem:[#allocation5 + $0x348] sm:$0xff]
        %v435 = vld [vmem:[#allocation5 + $0x350] sm:$0xff]
        %v436 = vld [vmem:[#allocation5 + $0x358] sm:$0xff]
        %v437 = vld [vmem:[#allocation5 + $0x360] sm:$0xff]
        %v438 = vld [vmem:[#allocation5 + $0x368] sm:$0xff]
        %v439 = vld [vmem:[#allocation5 + $0x370] sm:$0xff]
        %v440 = vld [vmem:[#allocation5 + $0x378] sm:$0xff]
        %v441 = vld [vmem:[#allocation5 + $0x380] sm:$0xff]
        %v442 = vld [vmem:[#allocation5 + $0x388] sm:$0xff]
        %v443 = vld [vmem:[#allocation5 + $0x390] sm:$0xff]
        %v444 = vld [vmem:[#allocation5 + $0x398] sm:$0xff]
        %v445 = vld [vmem:[#allocation5 + $0x3a0] sm:$0xff]
        %v446 = vld [vmem:[#allocation5 + $0x3a8] sm:$0xff]
        %v447 = vld [vmem:[#allocation5 + $0x3b0] sm:$0xff]
        %v448 = vld [vmem:[#allocation5 + $0x3b8] sm:$0xff]
        %v449 = vld [vmem:[#allocation5 + $0x3c0] sm:$0xff]
        %v450 = vld [vmem:[#allocation5 + $0x3c8] sm:$0xff]
        %v451 = vld [vmem:[#allocation5 + $0x3d0] sm:$0xff]
        %v452 = vld [vmem:[#allocation5 + $0x3d8] sm:$0xff]
        %v453 = vld [vmem:[#allocation5 + $0x3e0] sm:$0xff]
        %v454 = vld [vmem:[#allocation5 + $0x3e8] sm:$0xff]
        %v455 = vld [vmem:[#allocation5 + $0x3f0] sm:$0xff]
        %v456 = vld [vmem:[#allocation5 + $0x3f8] sm:$0xff]
        %v457 = vld [vmem:[%s4] sm:$0xf]
        %v459 = vlaneseq
        %v460 = vshrl.u32 %v459, 7
        %v461 = vsub.s32 0, %v460
        %v462 = vrot.slane %v328, %v461
        %v463 = vlaneseq
        %v464 = vshrl.u32 %v463, 7
        %v465 = vsub.s32 1, %v464
        %v466 = vrot.slane %v328, %v465
        %v470 = vlaneseq
        %v471 = vshrl.u32 %v470, 7
        %v472 = vsub.s32 0, %v471
        %v473 = vrot.slane %v457, %v472
        %v474 = vlaneseq
        %v475 = vshrl.u32 %v474, 7
        %v476 = vsub.s32 1, %v475
        %v477 = vrot.slane %v457, %v476
        %v478 = vlaneseq
        %v479 = vshrl.u32 %v478, 7
        %v480 = vsub.s32 2, %v479
        %v481 = vrot.slane %v457, %v480
        %v482 = vlaneseq
        %v483 = vshrl.u32 %v482, 7
        %v484 = vsub.s32 3, %v483
        %v485 = vrot.slane %v457, %v484
        %490 = vmatprep.subr.mxu0 %v330
        %491 = vmatpush1.msra.mxu0 %v329
        %492 = vmatprep.subr.mxu0 %v334
        %493 = vmatpush1.msra.mxu0 %v333
        %494 = vmatprep.subr.mxu0 %v338
        %495 = vmatpush1.msra.mxu0 %v337
        %496 = vmatprep.subr.mxu0 %v342
        %497 = vmatpush1.msra.mxu0 %v341
        %498 = vmatprep.subr.mxu0 %v346
        %499 = vmatpush1.msra.mxu0 %v345
        %500 = vmatprep.subr.mxu0 %v350
        %501 = vmatpush1.msra.mxu0 %v349
        %502 = vmatprep.subr.mxu0 %v354
        %503 = vmatpush1.msra.mxu0 %v353
        %504 = vmatprep.subr.mxu0 %v358
        %505 = vmatpush1.msra.mxu0 %v357
        %506 = vmatprep.subr.mxu0 %v362
        %507 = vmatpush1.msra.mxu0 %v361
        %508 = vmatprep.subr.mxu0 %v366
        %509 = vmatpush1.msra.mxu0 %v365
        %510 = vmatprep.subr.mxu0 %v370
        %511 = vmatpush1.msra.mxu0 %v369
        %512 = vmatprep.subr.mxu0 %v374
        %513 = vmatpush1.msra.mxu0 %v373
        %514 = vmatprep.subr.mxu0 %v378
        %515 = vmatpush1.msra.mxu0 %v377
        %516 = vmatprep.subr.mxu0 %v382
        %517 = vmatpush1.msra.mxu0 %v381
        %518 = vmatprep.subr.mxu0 %v386
        %519 = vmatpush1.msra.mxu0 %v385
        %520 = vmatprep.subr.mxu0 %v390
        %521 = vmatpush1.msra.mxu0 %v389
        %522 = vmatprep.subr.mxu0 %v394
        %523 = vmatpush1.msra.mxu0 %v393
        %524 = vmatprep.subr.mxu0 %v398
        %525 = vmatpush1.msra.mxu0 %v397
        %526 = vmatprep.subr.mxu0 %v402
        %527 = vmatpush1.msra.mxu0 %v401
        %528 = vmatprep.subr.mxu0 %v406
        %529 = vmatpush1.msra.mxu0 %v405
        %530 = vmatprep.subr.mxu0 %v410
        %531 = vmatpush1.msra.mxu0 %v409
        %532 = vmatprep.subr.mxu0 %v414
        %533 = vmatpush1.msra.mxu0 %v413
        %534 = vmatprep.subr.mxu0 %v418
        %535 = vmatpush1.msra.mxu0 %v417
        %536 = vmatprep.subr.mxu0 %v422
        %537 = vmatpush1.msra.mxu0 %v421
        %538 = vmatprep.subr.mxu0 %v426
        %539 = vmatpush1.msra.mxu0 %v425
        %540 = vmatprep.subr.mxu0 %v430
        %541 = vmatpush1.msra.mxu0 %v429
        %542 = vmatprep.subr.mxu0 %v434
        %543 = vmatpush1.msra.mxu0 %v433
        %544 = vmatprep.subr.mxu0 %v438
        %545 = vmatpush1.msra.mxu0 %v437
        %546 = vmatprep.subr.mxu0 %v442
        %547 = vmatpush1.msra.mxu0 %v441
        %548 = vmatprep.subr.mxu0 %v446
        %549 = vmatpush1.msra.mxu0 %v445
        %550 = vmatprep.subr.mxu0 %v450
        %551 = vmatpush1.msra.mxu0 %v449
        %552 = vmatprep.subr.mxu0 %v454
        %553 = vmatpush1.msra.mxu0 %v453
        %554 = vmatprep.mubr.f32.mxu0 %v466
        %555 = vmatmul.mubr.f32.gmra.mrb[0].mxu0 %v462
        %v556 = vpop.f32.mrb[0].mxu0
        %v557 = vadd.f32 %v473, %v556
        %v558 = vpop.f32.mrb[0].mxu0
        %v559 = vadd.f32 %v477, %v558
        %560 = vdwg.mxu0
        %561 = vmatprep.subr.mxu0 %v332
        %562 = vmatpush1.msra.mxu0 %v331
        %563 = vmatprep.subr.mxu0 %v336
        %564 = vmatpush1.msra.mxu0 %v335
        %565 = vmatprep.subr.mxu0 %v340
        %566 = vmatpush1.msra.mxu0 %v339
        %567 = vmatprep.subr.mxu0 %v344
        %568 = vmatpush1.msra.mxu0 %v343
        %569 = vmatprep.subr.mxu0 %v348
        %570 = vmatpush1.msra.mxu0 %v347
        %571 = vmatprep.subr.mxu0 %v352
        %572 = vmatpush1.msra.mxu0 %v351
        %573 = vmatprep.subr.mxu0 %v356
        %574 = vmatpush1.msra.mxu0 %v355
        %575 = vmatprep.subr.mxu0 %v360
        %576 = vmatpush1.msra.mxu0 %v359
        %577 = vmatprep.subr.mxu0 %v364
        %578 = vmatpush1.msra.mxu0 %v363
        %579 = vmatprep.subr.mxu0 %v368
        %580 = vmatpush1.msra.mxu0 %v367
        %581 = vmatprep.subr.mxu0 %v372
        %582 = vmatpush1.msra.mxu0 %v371
        %583 = vmatprep.subr.mxu0 %v376
        %584 = vmatpush1.msra.mxu0 %v375
        %585 = vmatprep.subr.mxu0 %v380
        %586 = vmatpush1.msra.mxu0 %v379
        %587 = vmatprep.subr.mxu0 %v384
        %588 = vmatpush1.msra.mxu0 %v383
        %589 = vmatprep.subr.mxu0 %v388
        %590 = vmatpush1.msra.mxu0 %v387
        %591 = vmatprep.subr.mxu0 %v392
        %592 = vmatpush1.msra.mxu0 %v391
        %593 = vmatprep.subr.mxu0 %v396
        %594 = vmatpush1.msra.mxu0 %v395
        %595 = vmatprep.subr.mxu0 %v400
        %596 = vmatpush1.msra.mxu0 %v399
        %597 = vmatprep.subr.mxu0 %v404
        %598 = vmatpush1.msra.mxu0 %v403
        %599 = vmatprep.subr.mxu0 %v408
        %600 = vmatpush1.msra.mxu0 %v407
        %601 = vmatprep.subr.mxu0 %v412
        %602 = vmatpush1.msra.mxu0 %v411
        %603 = vmatprep.subr.mxu0 %v416
        %604 = vmatpush1.msra.mxu0 %v415
        %605 = vmatprep.subr.mxu0 %v420
        %606 = vmatpush1.msra.mxu0 %v419
        %607 = vmatprep.subr.mxu0 %v424
        %608 = vmatpush1.msra.mxu0 %v423
        %609 = vmatprep.subr.mxu0 %v428
        %610 = vmatpush1.msra.mxu0 %v427
        %611 = vmatprep.subr.mxu0 %v432
        %612 = vmatpush1.msra.mxu0 %v431
        %613 = vmatprep.subr.mxu0 %v436
        %614 = vmatpush1.msra.mxu0 %v435
        %615 = vmatprep.subr.mxu0 %v440
        %616 = vmatpush1.msra.mxu0 %v439
        %617 = vmatprep.subr.mxu0 %v444
        %618 = vmatpush1.msra.mxu0 %v443
        %619 = vmatprep.subr.mxu0 %v448
        %620 = vmatpush1.msra.mxu0 %v447
        %621 = vmatprep.subr.mxu0 %v452
        %622 = vmatpush1.msra.mxu0 %v451
        %623 = vmatprep.subr.mxu0 %v456
        %624 = vmatpush1.msra.mxu0 %v455
        %625 = vmatprep.mubr.f32.mxu0 %v466
        %626 = vmatmul.mubr.f32.gmra.mrb[0].mxu0 %v462
        %v627 = vpop.f32.mrb[0].mxu0
        %v628 = vadd.f32 %v481, %v627
        %v629 = vpop.f32.mrb[0].mxu0
        %v630 = vadd.f32 %v485, %v629
        %631 = vdwg.mxu0
        %v632 = vxor.u32 %v557, 2147483648
        %v633 = vmul.f32 %v632, 1.442695
        %v634 = vpow.pop %v633
        %v635 = vadd.f32 %v634, 1.0
        %v636 = vrcp.pop %v635
        %v637 = vmul.f32 1.0, %v636
        %v638 = vxor.u32 %v559, 2147483648
        %v639 = vmul.f32 %v638, 1.442695
        %v640 = vpow.pop %v639
        %v641 = vadd.f32 %v640, 1.0
        %v642 = vrcp.pop %v641
        %v643 = vmul.f32 1.0, %v642
        %v644 = vmul.f32 %v637, %v630
        %v645 = vadd.f32 %v628, %v644
        %v646 = vtanh.pop %v645
        %v647 = vsub.f32 1.0, %v643
        %v648 = vmul.f32 %v647, %v646
        %v649 = vmul.f32 %v643, %v466
        %v650 = vadd.f32 %v648, %v649
        %651 = vst.msk [vmem:[#allocation2 + $0x1] sm:$0x1] %vm326, %v650
        %652 = vst [vmem:[#allocation10] sm:$0x1] %v650
        %v653 = vld [vmem:[#allocation8] sm:$0xff]
        %v654 = vld [vmem:[#allocation8 + $0x8] sm:$0xff]
        %v655 = vld [vmem:[#allocation8 + $0x10] sm:$0xff]
        %v656 = vld [vmem:[#allocation8 + $0x18] sm:$0xff]
        %v657 = vld [vmem:[#allocation8 + $0x20] sm:$0xff]
        %v658 = vld [vmem:[#allocation8 + $0x28] sm:$0xff]
        %v659 = vld [vmem:[#allocation8 + $0x30] sm:$0xff]
        %v660 = vld [vmem:[#allocation8 + $0x38] sm:$0xff]
        %v661 = vld [vmem:[#allocation8 + $0x40] sm:$0xff]
        %v662 = vld [vmem:[#allocation8 + $0x48] sm:$0xff]
        %v663 = vld [vmem:[#allocation8 + $0x50] sm:$0xff]
        %v664 = vld [vmem:[#allocation8 + $0x58] sm:$0xff]
        %v665 = vld [vmem:[#allocation8 + $0x60] sm:$0xff]
        %v666 = vld [vmem:[#allocation8 + $0x68] sm:$0xff]
        %v667 = vld [vmem:[#allocation8 + $0x70] sm:$0xff]
        %v668 = vld [vmem:[#allocation8 + $0x78] sm:$0xff]
        %v669 = vld [vmem:[%s6] sm:$0x1]
        %670 = vmatprep.subr.mxu0 0.0
        %671 = vmatpush1.msra.mxu0 %v653
        %672 = vmatprep.subr.mxu0 0.0
        %673 = vmatpush1.msra.mxu0 %v654
        %674 = vmatprep.subr.mxu0 0.0
        %675 = vmatpush1.msra.mxu0 %v655
        %676 = vmatprep.subr.mxu0 0.0
        %677 = vmatpush1.msra.mxu0 %v656
        %678 = vmatprep.subr.mxu0 0.0
        %679 = vmatpush1.msra.mxu0 %v657
        %680 = vmatprep.subr.mxu0 0.0
        %681 = vmatpush1.msra.mxu0 %v658
        %682 = vmatprep.subr.mxu0 0.0
        %683 = vmatpush1.msra.mxu0 %v659
        %684 = vmatprep.subr.mxu0 0.0
        %685 = vmatpush1.msra.mxu0 %v660
        %686 = vmatprep.subr.mxu0 0.0
        %687 = vmatpush1.msra.mxu0 %v661
        %688 = vmatprep.subr.mxu0 0.0
        %689 = vmatpush1.msra.mxu0 %v662
        %690 = vmatprep.subr.mxu0 0.0
        %691 = vmatpush1.msra.mxu0 %v663
        %692 = vmatprep.subr.mxu0 0.0
        %693 = vmatpush1.msra.mxu0 %v664
        %694 = vmatprep.subr.mxu0 0.0
        %695 = vmatpush1.msra.mxu0 %v665
        %696 = vmatprep.subr.mxu0 0.0
        %697 = vmatpush1.msra.mxu0 %v666
        %698 = vmatprep.subr.mxu0 0.0
        %699 = vmatpush1.msra.mxu0 %v667
        %700 = vmatprep.subr.mxu0 0.0
        %701 = vmatpush1.msra.mxu0 %v668
        %702 = vmatprep.subr.mxu0 0.0
        %703 = vmatpush1.msra.mxu0 0.0
        %704 = vmatprep.subr.mxu0 0.0
        %705 = vmatpush1.msra.mxu0 0.0
        %706 = vmatprep.subr.mxu0 0.0
        %707 = vmatpush1.msra.mxu0 0.0
        %708 = vmatprep.subr.mxu0 0.0
        %709 = vmatpush1.msra.mxu0 0.0
        %710 = vmatprep.subr.mxu0 0.0
        %711 = vmatpush1.msra.mxu0 0.0
        %712 = vmatprep.subr.mxu0 0.0
        %713 = vmatpush1.msra.mxu0 0.0
        %714 = vmatprep.subr.mxu0 0.0
        %715 = vmatpush1.msra.mxu0 0.0
        %716 = vmatprep.subr.mxu0 0.0
        %717 = vmatpush1.msra.mxu0 0.0
        %718 = vmatprep.subr.mxu0 0.0
        %719 = vmatpush1.msra.mxu0 0.0
        %720 = vmatprep.subr.mxu0 0.0
        %721 = vmatpush1.msra.mxu0 0.0
        %722 = vmatprep.subr.mxu0 0.0
        %723 = vmatpush1.msra.mxu0 0.0
        %724 = vmatprep.subr.mxu0 0.0
        %725 = vmatpush1.msra.mxu0 0.0
        %726 = vmatprep.subr.mxu0 0.0
        %727 = vmatpush1.msra.mxu0 0.0
        %728 = vmatprep.subr.mxu0 0.0
        %729 = vmatpush1.msra.mxu0 0.0
        %730 = vmatprep.subr.mxu0 0.0
        %731 = vmatpush1.msra.mxu0 0.0
        %732 = vmatprep.subr.mxu0 0.0
        %733 = vmatpush1.msra.mxu0 0.0
        %734 = vmatprep.mubr.f32.mxu0 0.0
        %735 = vmatmul.mubr.f32.gmra.mrb[0].mxu0 %v650
        %v736 = vpop.f32.mrb[0].mxu0
        %v737 = vadd.f32 %v669, %v736
        %v738 = vpop.f32.mrb[0].mxu0
        %739 = vdwg.mxu0
        %vm740 = vcmask 1040384
        %v741 = vsel %vm740, %v737, -inf
        %742 = vmax.xlane.f32.xlu0 %v741
        %v743 = vpop.xlane.xlu0 %742
        %v744 = vsub.f32 %v737, %v743
        %v745 = vmul.f32 %v744, 1.442695
        %v746 = vpow.pop %v745
        %v747 = vsel %vm740, %v746, 0.0
        %748 = vadd.xlane.f32.xlu0 %v747
        %v749 = vpop.xlane.xlu0 %748
        %v750 = vlog2.pop %v749
        %v751 = vmul.f32 %v750, 0.6931472
        %v752 = vadd.f32 %v751, %v743
        %v753 = vsub.f32 %v737, %v752
        %754 = vst [vmem:[%s311] sm:$0x1] %v753
        %p755 = scmp.lt.s32.totalorder %s29, 5
        %s756 = scalar_select %p755, %s29, 5
        %s757 = scalar_lea.vmem %s7, %s756
        // Predicated region
        $region57: #{decoder_forward.1} parent=43 // pred_check
          %p758 = pneg %p180
        $region58: #{decoder_forward.1} parent=43 // pred_check_branch
          %760 = sbr.rel (%p758) target = $region60
        $region59: #{decoder_forward.1} parent=43 // pred_region
          _
        $region60: #{decoder_forward.1} parent=43 // pred_fallthru
          _
        // Predicated region
        $region61: #{decoder_forward.1} parent=43 // pred_check
          %p761 = pneg %p201
        $region62: #{decoder_forward.1} parent=43 // pred_check_branch
          %763 = sbr.rel (%p761) target = $region64
        $region63: #{decoder_forward.1} parent=43 // pred_region
          %s765 = ssub.s32 16, 16
          %766 = vsyncadd [#allocation7], %s765
          %s768 = sshll.u32 [#allocation10], 4
          %s769 = int_to_ptr.vmem [resolvable:$true] %s768
          %771 = dma.vmem_to_hbm [thread:$0]  %s769, 16, %s8, [#allocation7]
        $region64: #{decoder_forward.1} parent=43 // pred_fallthru
          _
        // Predicated region
        $region65: #{decoder_forward.1} parent=43 // pred_check
          %p772 = pneg %p201
        $region66: #{decoder_forward.1} parent=43 // pred_check_branch
          %774 = sbr.rel (%p772) target = $region68
        $region67: #{decoder_forward.1} parent=43 // pred_region
          %775 = dma.done [#allocation7], 16
        $region68: #{decoder_forward.1} parent=43 // pred_fallthru
          _
      $region44: #{decoder_forward.1} parent=5 // pred_fallthru
        _
      %p776 = scmp.le.s32.totalorder 2, %s24
      // Predicated region
      $region69: #{decoder_forward.1} parent=5 // pred_check
        %p777 = pneg %p776
      $region70: #{decoder_forward.1} parent=5 // pred_check_branch
        %779 = sbr.rel (%p777) target = $region72
      $region71: #{decoder_forward.1} parent=5 // pred_region
        %s780 = ssub.s32 %s24, 2
        // Predicated region
        $region73: #{decoder_forward.1} parent=71 // pred_check
          %p781 = pneg %p186
        $region74: #{decoder_forward.1} parent=71 // pred_check_branch
          %783 = sbr.rel (%p781) target = $region76
        $region75: #{decoder_forward.1} parent=71 // pred_region
          %p784 = scmp.lt.s32.totalorder %s30, 5
          %s785 = scalar_select %p784, %s30, 5
          %s786 = scalar_lea.vmem %s7, %s785
        $region76: #{decoder_forward.1} parent=71 // pred_fallthru
          _
      $region72: #{decoder_forward.1} parent=5 // pred_fallthru
        _
    $region6: #{decoder_forward.1} parent=1 // loop_footer
      %s28 = sadd.s32 1, %s24
    $region7: #{decoder_forward.1} parent=1 // loop_footer_branch
      %23 = sbr.rel target = $region3
    $region8: #{decoder_forward.1} parent=1 // loop_exit
      _
    %787 = vsyncpa [#allocation6], 1
    %s788 = scalar_lea.sflag [#allocation6], 1
    %789 = vsyncpa %s788, 1
    %790 = vsyncpa [#allocation9], 1
    %791 = vsyncpa [#allocation7], 1
    %s792 = scalar_lea.sflag [#allocation7], 1
    %793 = vsyncpa %s792, 1

</llo_original>
